<compile_context>
chip_gen: v7x
topology: tpu7x:2x2x1
jax: 0.10.0
libtpu: 0.0.40
codegen_flags: <defaults>
</compile_context>

<pallas_src>
import functools

import jax
import jax.numpy as jnp
from jax.experimental import pallas as pl
from jax.experimental.pallas import tpu as pltpu

_LANE = 128


# --------------------------------------------------------------------------- #
# Hardware-aware sizing
# --------------------------------------------------------------------------- #
def _vmem_params():
    """(working-set budget, vmem_limit_bytes) derived from chip VMEM capacity."""
    cap = None
    try:
        cap = getattr(pltpu.get_tpu_info(), "vmem_capacity_bytes", None)
    except Exception:
        cap = None
    if not cap or cap <= 0:
        cap = 64 * 1024 * 1024  # conservative default (safe even on v7x)
    vmem_limit = (cap * 3) // 4     # 96 MiB on 128 MiB parts, 48 MiB on v7x
    budget = cap // 3               # double-buffered working-set target
    return int(budget), int(vmem_limit)


def _spatial_view(H, W):
    """Lane-dense (S, 128) spatial view when H*W is a multiple of 128."""
    hw = H * W
    if hw % _LANE == 0:
        return hw // _LANE, _LANE
    # Fallback: keep (H, W); blocks use the full trailing extent (legal even
    # when not (8,128)-divisible).  Masked stores, but no 1xHW sublane blow-up.
    return H, W


def _pick_s_tile(S, T, width, itemsize, budget):
    """Largest spatial tile (divisor of S, multiple of 8 or full) within budget."""
    per_row = 2 * width * T * itemsize          # x2: double-buffered x block
    cap = max(1, budget // max(per_row, 1))
    if S <= cap:
        return S                                # full extent is always legal
    best = None
    for d in range(8, cap + 1, 8):              # multiple-of-8 divisors of S
        if S % d == 0:
            best = d
    if best is not None:
        return best
    # No legal divisor within budget (pathological S): fall back to full extent.
    return S


# --------------------------------------------------------------------------- #
# Kernel
# --------------------------------------------------------------------------- #
def _stitch_write_kernel(x_ref, l_in_ref, l_new_ref, sem, *, i, width, s_tile):
    # x_ref:     (1, width, s_tile, T) VMEM block (auto-pipelined input).
    # l_in_ref:  full L in HBM (pl.ANY) -- present ONLY to carry the
    #            input/output alias; never read.
    # l_new_ref: full L_new in HBM (pl.ANY), aliased with l_in_ref.  Only the
    #            channel window [i, i+width) is ever written; everything else
    #            keeps L's original contents in place.
    del l_in_ref
    b = pl.program_id(0)
    s = pl.program_id(1)
    s_off = s * s_tile
    if s_tile % 8 == 0:
        s_off = pl.multiple_of(s_off, 8)
    cp = pltpu.make_async_copy(
        x_ref,
        l_new_ref.at[pl.ds(b, 1), pl.ds(i, width), pl.ds(s_off, s_tile), :],
        sem,
    )
    cp.start()
    cp.wait()


# --------------------------------------------------------------------------- #
# Wrapper
# --------------------------------------------------------------------------- #
def _stitch_copy_impl(x, L, i):
    B, width, H, W = x.shape
    _, CL, _, _ = L.shape
    c_out = i + width

    S, T = _spatial_view(H, W)
    itemsize = jnp.dtype(x.dtype).itemsize
    budget, vmem_limit = _vmem_params()

    x4 = x.reshape(B, width, S, T)   # trailing-dim reshape: free (bitcast)
    L4 = L.reshape(B, CL, S, T)

    if T % _LANE == 0:
        s_tile = _pick_s_tile(S, T, width, itemsize, budget)
    else:
        s_tile = S                   # non-lane-dense fallback: full extent
    n_s = max(1, S // s_tile)

    kernel = functools.partial(
        _stitch_write_kernel, i=i, width=width, s_tile=s_tile)

    l_new4 = pl.pallas_call(
        kernel,
        grid=(B, n_s),
        in_specs=[
            pl.BlockSpec((1, width, s_tile, T), lambda b, s: (b, 0, s, 0)),
            pl.BlockSpec(memory_space=pl.ANY),   # L: alias carrier only
        ],
        out_specs=pl.BlockSpec(memory_space=pl.ANY),
        out_shape=jax.ShapeDtypeStruct((B, CL, S, T), L.dtype),
        scratch_shapes=[pltpu.SemaphoreType.DMA(())],
        # L (input 1) is updated in place -> alias with output 0.  Channels
        # outside [i, i+width) are never touched and keep their old values.
        input_output_aliases={1: 0},
        compiler_params=pltpu.CompilerParams(
            dimension_semantics=("parallel", "parallel"),
            vmem_limit_bytes=vmem_limit,
        ),
    )(x4, L4)

    # "Kernel A" dropped: the returned slice comes straight from the aliased
    # buffer (PyTorch narrow() semantics); XLA materializes it with one cheap
    # slice copy only because the module API must return a separate array.
    out4 = l_new4[:, :c_out]
    return l_new4.reshape(B, CL, H, W), out4.reshape(B, c_out, H, W)


@functools.partial(jax.jit, static_argnums=(2,), donate_argnums=(1,))
def _stitch_copy_jit(x, L, i):
    return _stitch_copy_impl(x, L, i)


def stitch_copy(x, L, i):
    """Pallas implementation of StitchCopyFunction.forward.

    Returns (L_new, out) where L_new is L with channels [i, i+width)
    overwritten by x (in place via aliasing + donation) and
    out = L_new[:, :i+width].
    """
    assert x.dtype == L.dtype, (
        f"Input type ({x.dtype}) and layer L type ({L.dtype}) should be the same.")
    B, width, H, W = x.shape
    Bl, CL, Hl, Wl = L.shape
    assert (B, H, W) == (Bl, Hl, Wl)
    assert 0 <= i and i + width <= CL
    return _stitch_copy_jit(x, L, int(i))


# --------------------------------------------------------------------------- #
# Module-level plumbing (mirrors msd_pytorch)
# --------------------------------------------------------------------------- #
class StitchBuffer:
    """Stand-in for msd_pytorch's StitchBuffer."""

    def __init__(self, B, C, H, W, dtype=jnp.float32):
        self.L = jnp.zeros((B, C, H, W), dtype=dtype)  # layer outputs
        self.G = jnp.zeros((B, C, H, W), dtype=dtype)  # gradients (backward only)


class StitchCopyModule:
    def __init__(self, buffer, i):
        self.buffer = buffer
        self.i = i

    def forward(self, x):
        l_new, out = stitch_copy(x, self.buffer.L, self.i)
        # Mirror the in-place buffer mutation of the torch implementation.
        # (The old self.buffer.L was donated; it must not be used again.)
        self.buffer.L = l_new
        return out
        # TODO(synk): backward pass (grad accumulation into buffer G) is
        # autograd-only in the torch module and is not part of this forward kernel.


if __name__ == "__main__":
    key = jax.random.PRNGKey(0)
    B, width, H, W = 2, 4, 16, 16   # input: (2, 4, 16, 16)
    CL = 8                          # stitch buffer channels
    i = 2                           # channel offset of this stitch

    kx, kl = jax.random.split(key)
    x = jax.random.normal(kx, (B, width, H, W), dtype=jnp.float32)
    buf = StitchBuffer(B, CL, H, W)
    # Pre-fill L so the returned prefix L[:, :i] exercises existing contents.
    buf.L = jax.random.normal(kl, (B, CL, H, W), dtype=jnp.float32)

    # Reference semantics (plain JAX), computed BEFORE the (donating) update.
    L_expected = buf.L.at[:, i:i + width].set(x)
    out_expected = L_expected[:, :i + width]

    module = StitchCopyModule(buf, i)
    out = jax.block_until_ready(module.forward(x))
    L_after = jax.block_until_ready(module.buffer.L)

    assert out.shape == (B, i + width, H, W)
    assert jnp.allclose(L_after, L_expected)
    assert jnp.allclose(out, out_expected)

    print("KERNEL_OK")
</pallas_src>

<mosaic_0001>
module attributes {stable_mosaic.version = 11 : i64} {
  func.func @_stitch_write_kernel(%arg0: i32, %arg1: i32, %arg2: memref<1x4x2x128xf32, #tpu.memory_space<vmem>>, %arg3: memref<2x8x2x128xf32, #tpu.memory_space<any>>, %arg4: memref<2x8x2x128xf32, #tpu.memory_space<any>>, %arg5: memref<!tpu.dma_semaphore, #tpu.memory_space<semaphore_mem>>) attributes {dimension_semantics = [#tpu.dimension_semantics<parallel>, #tpu.dimension_semantics<parallel>], iteration_bounds = array<i64: 2, 1>, scalar_prefetch = 0 : i64, scratch_operands = 1 : i64, tpu.core_type = #tpu.core_type<tc>, window_params = [{transform_indices = @transform_0, window_bounds = array<i64: 1, 4, 2, 128>}, {}, {}]} {
    %c2_i32 = arith.constant 2 : i32
    %0 = arith.muli %arg1, %c2_i32 : i32
    %c2_i32_0 = arith.constant 2 : i32
    %c0_i32 = arith.constant 0 : i32
    %1 = tpu.memref_slice %arg4[%arg0, %c2_i32_0, %0, %c0_i32] : memref<2x8x2x128xf32, #tpu.memory_space<any>> -> memref<1x4x2x128xf32, #tpu.memory_space<any>>
    tpu.enqueue_dma source(%arg2 : memref<1x4x2x128xf32, #tpu.memory_space<vmem>>) target(%1 : memref<1x4x2x128xf32, #tpu.memory_space<any>>) target_semaphore(%arg5 : memref<!tpu.dma_semaphore, #tpu.memory_space<semaphore_mem>>)
    %c2_i32_1 = arith.constant 2 : i32
    %c0_i32_2 = arith.constant 0 : i32
    %2 = tpu.memref_slice %arg4[%arg0, %c2_i32_1, %0, %c0_i32_2] : memref<2x8x2x128xf32, #tpu.memory_space<any>> -> memref<1x4x2x128xf32, #tpu.memory_space<any>>
    tpu.wait_dma2 semaphore(%arg5 : memref<!tpu.dma_semaphore, #tpu.memory_space<semaphore_mem>>) src(%arg2 : memref<1x4x2x128xf32, #tpu.memory_space<vmem>>) dst(%2 : memref<1x4x2x128xf32, #tpu.memory_space<any>>)
    return
  }
  func.func @transform_0(%arg0: i32, %arg1: i32) -> (i32, i32, i32, i32) {
    %c0_i32 = arith.constant 0 : i32
    %c0_i32_0 = arith.constant 0 : i32
    %c0_i32_1 = arith.constant 0 : i32
    return %arg0, %c0_i32, %arg1, %c0_i32_0 : i32, i32, i32, i32
  }
}

</mosaic_0001>

<llo_original>
// kernel: _stitch_copy_jit.1
$region0: #{_stitch_copy_jit.1}
  #allocation0 [shape = 'u32[]', space=smem, size = 0x4, offset = 0x4, fixed_abs, tag = 'smem constant byte address 0x4 - core index']
  #allocation1 [shape = 'u32[144,128]{1,0:T(1,128)}', space=vmem, size = 0x12000, scoped, tag = 'internal scratch']
  #allocation2 [shape = 's32[1]{0}', space=sflag, size = 0x4, scoped, tag = 'scratch operand']
  #allocation3 [shape = 's32[]', space=sflag, size = 0x4, offset = 0, fixed_abs, tag = 'sflag constant byte address 0x0 - dummy sync flag']
  %s0 = inlined_call_operand.vmem [shape: f32[2,4,2,128], index: 0, kind: input, shape index: {}]
  %s1 = inlined_call_operand.vmem [shape: f32[2,8,2,128], index: 1, kind: input, shape index: {}, may-alias: {1,2}]
  %s2 = inlined_call_operand.vmem [shape: f32[2,8,2,128], index: 2, kind: output, shape index: {}, may-alias: {1,2}]
  %s3 = sld [smem:[#allocation0]]
  $region59: #{_stitch_copy_jit.1} parent=0
    _
  %s5 = ssub.s32 1, %s3
  %s6 = scalar_select 0, %s5, %s3
  loop: start=0, step=1, limit=3
  $region2: #{_stitch_copy_jit.1} parent=0 // loop_pre_header
    _
  $region3: #{_stitch_copy_jit.1} parent=0 // loop_header
    %s8 = sphi 0, %s12
    %p9 = scmp.ge.s32.totalorder %s8, 3
    %s14 = sphi 0, %s24
    %s15 = sphi 0, %s20
    %s16 = sphi 0, %s14
    %s17 = sphi 0, %s15
    %s29 = sphi 0, %s31
    %s32 = sphi 0, %s29
    %s42 = sphi 0, %s32
  $region4: #{_stitch_copy_jit.1} parent=0 // loop_header_branch
    %11 = sbr.rel (%p9) target = $region8
  $region5: #{_stitch_copy_jit.1} parent=0 // loop_body
    %s13 = ssub.s32 %s8, 1
    %s18 = sadd.s32 1, %s15
    %p19 = scmp.ge.s32.totalorder %s18, 1
    %s20 = scalar_select %p19, 0, %s18
    %s21 = sadd.s32 1, %s14
    %s22 = scalar_select %p19, %s21, %s14
    %p23 = scmp.ge.s32.totalorder %s22, 2
    %s24 = scalar_select %p23, 0, %s22
    %s25 = ssub.s32 %s14, %s24
    %s26 = ssub.s32 %s15, %s20
    %s27 = sor.u32 %s25, %s26
    %p28 = scmp.eq.s32.totalorder %s27, 0
    %s30 = sadd.s32 %s29, 1
    %s31 = scalar_select %p28, %s29, %s30
    %p33 = pneg %p28
    %p34 = scmp.eq.s32.totalorder %s8, 1
    %p35 = por %p33, %p34
    %p36 = scmp.ne.s32.totalorder %s29, %s32
    %p37 = scmp.eq.s32.totalorder %s8, 0
    %p38 = por %p36, %p37
    %p39 = scmp.ne.s32.totalorder %s29, %s32
    %p40 = scmp.eq.s32.totalorder %s13, 1
    %p41 = por %p39, %p40
    %p43 = scmp.ne.s32.totalorder %s32, %s42
    %p44 = scmp.eq.s32.totalorder %s13, 0
    %p45 = por %p43, %p44
    %p46 = scmp.le.s32.totalorder 1, %s8
    // Predicated region
    $region9: #{_stitch_copy_jit.1} parent=5 // pred_check
      %p47 = pneg %p46
    $region10: #{_stitch_copy_jit.1} parent=5 // pred_check_branch
      %49 = sbr.rel (%p47) target = $region12
    $region11: #{_stitch_copy_jit.1} parent=5 // pred_region
      %s50 = ssub.s32 %s8, 1
    $region12: #{_stitch_copy_jit.1} parent=5 // pred_fallthru
      _
    %p51 = scmp.lt.s32.totalorder %s8, 2
    // Predicated region
    $region13: #{_stitch_copy_jit.1} parent=5 // pred_check
      %p52 = pneg %p51
    $region14: #{_stitch_copy_jit.1} parent=5 // pred_check_branch
      %54 = sbr.rel (%p52) target = $region16
    $region15: #{_stitch_copy_jit.1} parent=5 // pred_region
      // Predicated region
      $region17: #{_stitch_copy_jit.1} parent=15 // pred_check
        %p55 = pneg %p38
      $region18: #{_stitch_copy_jit.1} parent=15 // pred_check_branch
        %57 = sbr.rel (%p55) target = $region20
      $region19: #{_stitch_copy_jit.1} parent=15 // pred_region
        %p58 = scmp.lt.s32.totalorder %s14, 1
        %s59 = scalar_select %p58, %s14, 1
        %p60 = scmp.lt.s32.totalorder %s15, 0
        %s61 = scalar_select %p60, %s15, 0
        %s62 = smul.addr %s59, 4
        %s63 = sadd.s32 %s61, %s62
        %s64 = smul.addr %s63, 2
        %s65 = scalar_lea.vmem %s0, %s64
      $region20: #{_stitch_copy_jit.1} parent=15 // pred_fallthru
        _
    $region16: #{_stitch_copy_jit.1} parent=5 // pred_fallthru
      _
    %p66 = scmp.le.s32.totalorder 1, %s8
    // Predicated region
    $region21: #{_stitch_copy_jit.1} parent=5 // pred_check
      %p67 = pneg %p66
    $region22: #{_stitch_copy_jit.1} parent=5 // pred_check_branch
      %69 = sbr.rel (%p67) target = $region24
    $region23: #{_stitch_copy_jit.1} parent=5 // pred_region
      %s70 = ssub.s32 %s8, 1
      %p71 = scmp.lt.s32.totalorder %s16, 1
      %s72 = scalar_select %p71, %s16, 1
      %p73 = scmp.lt.s32.totalorder %s17, 0
      %s74 = scalar_select %p73, %s17, 0
      %s75 = smul.addr %s72, 4
      %s76 = sadd.s32 %s74, %s75
      %s77 = smul.addr %s76, 2
      %s78 = scalar_lea.vmem %s0, %s77
      %p79 = pneg %p45
      %p80 = pneg %p41
      %p81 = scmp.lt.s32.totalorder %s16, 1
      %s82 = scalar_select %p81, %s16, 1
      %p83 = scmp.lt.s32.totalorder %s17, 0
      %s84 = scalar_select %p83, %s17, 0
      %s85 = smul.addr %s82, 4
      %s86 = sadd.s32 %s84, %s85
      %s87 = smul.addr %s86, 2
      %s88 = scalar_lea.vmem %s0, %s87
      %s89 = smul.u32 %s17, 2
      %s90 = sadd.s32 %s89, 4
      %s91 = smul.u32 %s16, 16
      %s92 = sadd.s32 %s90, %s91
      %s93 = scalar_lea.vmem %s2, %s92
      %p95 = scmp.lt.u32.totalorder 8, 8
      %p96 = pneg %p95
      // Predicated region
      $region25: #{_stitch_copy_jit.1} parent=23 // pred_check
        _
      $region26: #{_stitch_copy_jit.1} parent=23 // pred_check_branch
        %98 = sbr.rel (%p95) target = $region28
      $region27: #{_stitch_copy_jit.1} parent=23 // pred_region
        %s113 = sand.u32 8, 7
        %p114 = scmp.eq.s32.totalorder %s113, 0
        // Predicated region
        $region40: #{_stitch_copy_jit.1} parent=27 // pred_check
          %p115 = pneg %p114
        $region41: #{_stitch_copy_jit.1} parent=27 // pred_check_branch
          %117 = sbr.rel (%p115) target = $region43
        $region42: #{_stitch_copy_jit.1} parent=27 // pred_region
          loop: start=0, step=1, limit=1
          $region44: #{_stitch_copy_jit.1} parent=42 // loop_pre_header
            _
          $region45: #{_stitch_copy_jit.1} parent=42 // loop_header
            %s119 = sphi 0, %s123
            %p120 = scmp.ge.s32.totalorder %s119, 1
            %s124 = sphi %s88, %s88
            %s125 = sphi %s93, %s93
          $region46: #{_stitch_copy_jit.1} parent=42 // loop_header_branch
            %122 = sbr.rel (%p120) target = $region50
          $region47: #{_stitch_copy_jit.1} parent=42 // loop_body
            %v126 = vld [vmem:[%s124] sm:$0xff]
            %127 = vst [vmem:[%s125] sm:$0xff] %v126
          $region48: #{_stitch_copy_jit.1} parent=42 // loop_footer
            %s123 = sadd.s32 1, %s119
          $region49: #{_stitch_copy_jit.1} parent=42 // loop_footer_branch
            %118 = sbr.rel target = $region45
          $region50: #{_stitch_copy_jit.1} parent=42 // loop_exit
            _
        $region43: #{_stitch_copy_jit.1} parent=27 // pred_fallthru
          _
        %p128 = pneg %p114
        // Predicated region
        $region51: #{_stitch_copy_jit.1} parent=27 // pred_check
          _
        $region52: #{_stitch_copy_jit.1} parent=27 // pred_check_branch
          %130 = sbr.rel (%p114) target = $region54
        $region53: #{_stitch_copy_jit.1} parent=27 // pred_region
          %s131 = sand.u32 8, 7
        $region54: #{_stitch_copy_jit.1} parent=27 // pred_fallthru
          _
      $region28: #{_stitch_copy_jit.1} parent=23 // pred_fallthru
        _
      // Predicated region
      $region29: #{_stitch_copy_jit.1} parent=23 // pred_check
        %p99 = pneg %p95
      $region30: #{_stitch_copy_jit.1} parent=23 // pred_check_branch
        %101 = sbr.rel (%p99) target = $region32
      $region31: #{_stitch_copy_jit.1} parent=23 // pred_region
        %s102 = sshllo.u32 0, 8
        loop: start=0, step=1, limit=1
        $region33: #{_stitch_copy_jit.1} parent=31 // loop_pre_header
          _
        $region34: #{_stitch_copy_jit.1} parent=31 // loop_header
          %s104 = sphi 0, %s108
          %p105 = scmp.ge.s32.totalorder %s104, 1
          %s109 = sphi %s88, %s88
          %s110 = sphi %s93, %s93
        $region35: #{_stitch_copy_jit.1} parent=31 // loop_header_branch
          %107 = sbr.rel (%p105) target = $region39
        $region36: #{_stitch_copy_jit.1} parent=31 // loop_body
          %v111 = vld [vmem:[%s109] sm:%s102]
          %112 = vst [vmem:[%s110] sm:%s102] %v111
        $region37: #{_stitch_copy_jit.1} parent=31 // loop_footer
          %s108 = sadd.s32 1, %s104
        $region38: #{_stitch_copy_jit.1} parent=31 // loop_footer_branch
          %103 = sbr.rel target = $region34
        $region39: #{_stitch_copy_jit.1} parent=31 // loop_exit
          _
      $region32: #{_stitch_copy_jit.1} parent=23 // pred_fallthru
        _
      // Predicated region
      $region55: #{_stitch_copy_jit.1} parent=23 // pred_check
        _
      $region56: #{_stitch_copy_jit.1} parent=23 // pred_check_branch
        %134 = sbr.rel (0) target = $region58
      $region57: #{_stitch_copy_jit.1} parent=23 // pred_region
        %135 = vsyncadd [#allocation2], 128
      $region58: #{_stitch_copy_jit.1} parent=23 // pred_fallthru
        _
      %s136 = smul.u32 1, 4
      %s137 = smul.u32 %s136, 2
      %s138 = smul.u32 %s137, 1
      %s139 = sshll.u32 %s138, 4
      %140 = dma.done [#allocation2], %s139
    $region24: #{_stitch_copy_jit.1} parent=5 // pred_fallthru
      _
  $region6: #{_stitch_copy_jit.1} parent=0 // loop_footer
    %s12 = sadd.s32 1, %s8
  $region7: #{_stitch_copy_jit.1} parent=0 // loop_footer_branch
    %7 = sbr.rel target = $region3
  $region8: #{_stitch_copy_jit.1} parent=0 // loop_exit
    _
  %141 = vsyncmov [#allocation2]
  %s142 = vpop.sfrf %141
  %p143 = scmp.eq.s32.totalorder %s142, 0
  %p144 = pneg %p143
  %146 = shalt.err (%p144)

</llo_original>
